<compile_context>
chip_gen: v5e
topology: v5e:2x2
jax: 0.10.0
libtpu: 0.0.40
codegen_flags: <defaults>
</compile_context>

<pallas_src>
import functools
import math

import jax
import jax.numpy as jnp
from jax.experimental import pallas as pl
from jax.experimental.pallas import tpu as pltpu


# ----------------------------------------------------------------------------
# Exact operator matrices (static python, used only at init for weight fusion)
# ----------------------------------------------------------------------------
def _pool_matrix(l_in):
    """AvgPool1d(kernel_size=2, stride=2): out[j] = 0.5*(x[2j] + x[2j+1])."""
    l_out = l_in // 2
    m = [[0.0] * l_out for _ in range(l_in)]
    for j in range(l_out):
        m[2 * j][j] = 0.5
        m[2 * j + 1][j] = 0.5
    return jnp.asarray(m, dtype=jnp.float32)


def _interp_matrix(l_in, l_out):
    """F.interpolate(mode='linear', align_corners=True) as an (l_in, l_out) matrix."""
    m = [[0.0] * l_out for _ in range(l_in)]
    if l_out == 1:
        m[0][0] = 1.0
        return jnp.asarray(m, dtype=jnp.float32)
    scale = (l_in - 1) / (l_out - 1)
    for i in range(l_out):
        pos = i * scale
        i0 = min(int(math.floor(pos)), l_in - 1)
        i1 = min(i0 + 1, l_in - 1)
        frac = pos - i0
        m[i0][i] += 1.0 - frac
        m[i1][i] += frac
    return jnp.asarray(m, dtype=jnp.float32)


# ----------------------------------------------------------------------------
# Pallas kernel: fused forward pass on one row-tile of (B*C, seq_len)
#   3 matmuls total:
#     x (N,seq) @ Wcat (seq,4.5P)          stage 1 (fc5|fc10|fc13|fc16 + pool/interp)
#     a1 (N,4.5P) @ Wblk (4.5P,4.75P)      stage 2, block-diagonal (LN affine folded)
#     a2 (N,4.75P) @ Wstk (4.75P,P)        stage 3, stacked-K (fc8 chunks folded)
# ----------------------------------------------------------------------------
def net_kernel(x_ref, wcat_ref, wblk_ref, wstk_ref, bias_ref, o_ref, *, pred_len):
    P = pred_len
    W1 = 4 * P + P // 2            # stage-1 width: [t 2P | t1 P | t2 P/2 | t4 P]
    W2 = P // 2 + P // 4 + 4 * P   # stage-2 width: [t P/2 | t1 P/4 | t2 2P | t4 2P]

    def mm(a, w):
        # bf16 MXU operands, f32 accumulation.
        return jnp.dot(a, w, preferred_element_type=jnp.float32)

    def seg_layernorm(y, widths):
        # Affine-free LayerNorm per lane segment (gamma/beta folded into the
        # next matmul at init).  var = E[x^2] - mu^2 so the two cross-lane
        # reductions are independent (shorter serial XLU chain).
        parts, off = [], 0
        for w in widths:
            v = y[:, off:off + w]
            mu = jnp.mean(v, axis=-1, keepdims=True)
            ex2 = jnp.mean(v * v, axis=-1, keepdims=True)
            var = ex2 - mu * mu
            parts.append((v - mu) * jax.lax.rsqrt(var + 1e-5))
            off += w
        return jnp.concatenate(parts, axis=-1)

    # packed bias slab: row 0 -> stage-1 bias, row 1 -> stage-2, row 2 -> output
    bcat = bias_ref[0:1, :W1]
    bblk = bias_ref[1:2, :W2]
    bout = bias_ref[2:3, :P]

    # --- stage 1: all four first linears (+pool/interp folded) in one push ---
    y1 = mm(x_ref[...], wcat_ref[...]) + bcat
    a1 = seg_layernorm(y1, (2 * P, P, P // 2, P))          # ln1 | ln3 | ln5 | ln7

    # --- stage 2: block-diagonal fused matmul --------------------------------
    y2 = mm(a1.astype(jnp.bfloat16), wblk_ref[...]) + bblk
    a2 = seg_layernorm(y2, (P // 2, P // 4, 2 * P, 2 * P))  # ln2 | ln4 | ln6 | ln8

    # --- stage 3: stacked-K matmul (MXU accumulation replaces branch adds) ---
    o_ref[...] = mm(a2.astype(jnp.bfloat16), wstk_ref[...]) + bout


# ----------------------------------------------------------------------------
# Raw parameter init (mirrors nn.Linear / nn.LayerNorm defaults)
# ----------------------------------------------------------------------------
def init_raw_params(key, seq_len, pred_len):
    P = pred_len
    assert P % 4 == 0, "pred_len must be a multiple of 4"

    def linear(k, din, dout):
        kw, kb = jax.random.split(k)
        bound = 1.0 / math.sqrt(din)
        w = jax.random.uniform(kw, (din, dout), jnp.float32, -bound, bound)
        b = jax.random.uniform(kb, (1, dout), jnp.float32, -bound, bound)
        return w, b

    specs = {
        "fc5": (seq_len, 4 * P), "fc6": (2 * P, P), "fc7": (P // 2, P),
        "fc10": (seq_len, 2 * P), "fc11": (P, P // 2), "fc12": (P // 4, P),
        "fc13": (seq_len, P // 4), "fc14": (P // 2, P), "fc15": (2 * P, P),
        "fc16": (seq_len, P // 2), "fc17": (P, P), "fc18": (2 * P, P),
        "fc8": (4 * P, P),
    }
    keys = jax.random.split(key, len(specs))
    p = {}
    for k, (name, (din, dout)) in zip(keys, specs.items()):
        w, b = linear(k, din, dout)
        p[name + "_w"] = w
        p[name + "_b"] = b

    ln_dims = {"ln1": 2 * P, "ln2": P // 2, "ln3": P, "ln4": P // 4,
               "ln5": P // 2, "ln6": 2 * P, "ln7": P, "ln8": 2 * P}
    for name, d in ln_dims.items():
        p[name + "_gamma"] = jnp.ones((1, d), jnp.float32)
        p[name + "_beta"] = jnp.zeros((1, d), jnp.float32)
    return p


# ----------------------------------------------------------------------------
# Compile-time weight fusion: pool / interp / LN-affine / fc8 folded into
# three matrices + one packed bias slab.
# ----------------------------------------------------------------------------
def fuse_params(p, seq_len, pred_len):
    P = pred_len
    W1 = 4 * P + P // 2
    W2 = P // 2 + P // 4 + 4 * P

    pool_4p = _pool_matrix(4 * P)
    pool_2p = _pool_matrix(2 * P)
    pool_p = _pool_matrix(P)
    pool_hp = _pool_matrix(P // 2)
    interp_q = _interp_matrix(P // 4, P // 2)
    interp_h = _interp_matrix(P // 2, P)
    interp_p = _interp_matrix(P, 2 * P)

    def fold_ln(ln_name, w, b):
        # (g*v_hat + be) @ W + b  ==  v_hat @ (diag(g) @ W) + (be @ W + b)
        g = p[ln_name + "_gamma"].reshape(-1, 1)
        be = p[ln_name + "_beta"]
        return g * w, be @ w + b

    # --- stage 1: fold pool/interp, concatenate branches (order t,t1,t2,t4) --
    w5f, b5f = p["fc5_w"] @ pool_4p, p["fc5_b"] @ pool_4p      # seq -> 2P
    w10f, b10f = p["fc10_w"] @ pool_2p, p["fc10_b"] @ pool_2p  # seq -> P
    w13f, b13f = p["fc13_w"] @ interp_q, p["fc13_b"] @ interp_q  # seq -> P/2
    w16f, b16f = p["fc16_w"] @ interp_h, p["fc16_b"] @ interp_h  # seq -> P
    wcat = jnp.concatenate([w5f, w10f, w13f, w16f], axis=1)    # (seq, 4.5P)
    bcat = jnp.concatenate([b5f, b10f, b13f, b16f], axis=1)

    # --- stage 2: fold LN1/3/5/7 affine + pool/interp, then block-diagonal ---
    w6a, b6a = fold_ln("ln1", p["fc6_w"], p["fc6_b"])
    w6f, b6f = w6a @ pool_p, b6a @ pool_p            # (2P, P/2)
    w11a, b11a = fold_ln("ln3", p["fc11_w"], p["fc11_b"])
    w11f, b11f = w11a @ pool_hp, b11a @ pool_hp      # (P, P/4)
    w14a, b14a = fold_ln("ln5", p["fc14_w"], p["fc14_b"])
    w14f, b14f = w14a @ interp_p, b14a @ interp_p    # (P/2, 2P)
    w17a, b17a = fold_ln("ln7", p["fc17_w"], p["fc17_b"])
    w17f, b17f = w17a @ interp_p, b17a @ interp_p    # (P, 2P)

    r = [0, 2 * P, 3 * P, 3 * P + P // 2, W1]                       # stage-1 segs
    c = [0, P // 2, P // 2 + P // 4, P // 2 + P // 4 + 2 * P, W2]   # stage-2 segs
    wblk = jnp.zeros((W1, W2), jnp.float32)
    wblk = wblk.at[r[0]:r[1], c[0]:c[1]].set(w6f)
    wblk = wblk.at[r[1]:r[2], c[1]:c[2]].set(w11f)
    wblk = wblk.at[r[2]:r[3], c[2]:c[3]].set(w14f)
    wblk = wblk.at[r[3]:r[4], c[3]:c[4]].set(w17f)
    bblk = jnp.concatenate([b6f, b11f, b14f, b17f], axis=1)

    # --- stage 3: fold LN2/4/6/8 affine + fc8 chunks, stack K ----------------
    # torch cat order is (t, t2, t1, t4) -> fc8 row chunks:
    w8, b8 = p["fc8_w"], p["fc8_b"]
    w8_t, w8_t2, w8_t1, w8_t4 = w8[0:P], w8[P:2 * P], w8[2 * P:3 * P], w8[3 * P:4 * P]
    w7a, b7a = fold_ln("ln2", p["fc7_w"], p["fc7_b"])
    w12a, b12a = fold_ln("ln4", p["fc12_w"], p["fc12_b"])
    w15a, b15a = fold_ln("ln6", p["fc15_w"], p["fc15_b"])
    w18a, b18a = fold_ln("ln8", p["fc18_w"], p["fc18_b"])
    # row order must match Wblk column order: t, t1, t2, t4
    wstk = jnp.concatenate(
        [w7a @ w8_t, w12a @ w8_t1, w15a @ w8_t2, w18a @ w8_t4], axis=0)  # (4.75P, P)
    bout = b7a @ w8_t + b12a @ w8_t1 + b15a @ w8_t2 + b18a @ w8_t4 + b8

    # pack the three bias rows into one (3, max_w) slab (single operand/DMA)
    max_w = max(W1, W2, P)
    pad = lambda b: jnp.pad(b, ((0, 0), (0, max_w - b.shape[1])))
    bias_pack = jnp.concatenate([pad(bcat), pad(bblk), pad(bout)], axis=0)

    bf = lambda w: w.astype(jnp.bfloat16)   # matmul operands in bf16
    return [bf(wcat), bf(wblk), bf(wstk), bias_pack]


# ----------------------------------------------------------------------------
# Pure-JAX unfused reference (mirrors the torch forward) for verification.
# ----------------------------------------------------------------------------
def reference_forward(t, p, pred_len):
    P = pred_len
    B, C, I = t.shape
    x = t.reshape(B * C, I).astype(jnp.float32)

    def lin(v, name):
        return v @ p[name + "_w"] + p[name + "_b"]

    def pool(v):
        n, l = v.shape
        return v.reshape(n, l // 2, 2).mean(axis=-1)

    def interp2(v):
        return v @ _interp_matrix(v.shape[-1], 2 * v.shape[-1])

    def ln(v, name):
        mu = jnp.mean(v, axis=-1, keepdims=True)
        var = jnp.mean((v - mu) ** 2, axis=-1, keepdims=True)
        vhat = (v - mu) * jax.lax.rsqrt(var + 1e-5)
        return vhat * p[name + "_gamma"] + p[name + "_beta"]

    t0 = lin(x, "fc5"); t0 = pool(t0); t0 = ln(t0, "ln1")
    t0 = lin(t0, "fc6"); t0 = pool(t0); t0 = ln(t0, "ln2"); t0 = lin(t0, "fc7")
    t1 = lin(x, "fc10"); t1 = pool(t1); t1 = ln(t1, "ln3")
    t1 = lin(t1, "fc11"); t1 = pool(t1); t1 = ln(t1, "ln4"); t1 = lin(t1, "fc12")
    t2 = lin(x, "fc13"); t2 = interp2(t2); t2 = ln(t2, "ln5")
    t2 = lin(t2, "fc14"); t2 = interp2(t2); t2 = ln(t2, "ln6"); t2 = lin(t2, "fc15")
    t4 = lin(x, "fc16"); t4 = interp2(t4); t4 = ln(t4, "ln7")
    t4 = lin(t4, "fc17"); t4 = interp2(t4); t4 = ln(t4, "ln8"); t4 = lin(t4, "fc18")

    cat = jnp.concatenate([t0, t2, t1, t4], axis=1)
    out = lin(cat, "fc8").reshape(B, C, P)
    return jnp.transpose(out, (0, 2, 1))


# ----------------------------------------------------------------------------
# Wrapper
# ----------------------------------------------------------------------------
def net_forward(t, params, *, seq_len, pred_len, row_tile=None):
    B, C, I = t.shape
    assert I == seq_len
    N = B * C
    if row_tile is None:
        # One big block for small N (no per-step overhead); 1024-row tiles for
        # large N so the grid has >= 2 steps (both v7x TensorCores get work)
        # while the double-buffered working set stays tiny (<< VMEM limits).
        row_tile = N if N <= 1024 else 1024

    x = t.reshape(N, I).astype(jnp.bfloat16)   # bf16 halves the input DMA bytes
    n_pad = (-N) % row_tile
    if n_pad:
        x = jnp.pad(x, ((0, n_pad), (0, 0)))
    Np = N + n_pad

    in_specs = [pl.BlockSpec((row_tile, seq_len), lambda i: (i, 0))]
    for p in params:
        # grid-invariant full-array weight/bias blocks
        in_specs.append(pl.BlockSpec(p.shape, lambda i: (0, 0)))

    out = pl.pallas_call(
        functools.partial(net_kernel, pred_len=pred_len),
        out_shape=jax.ShapeDtypeStruct((Np, pred_len), jnp.float32),
        grid=(Np // row_tile,),
        in_specs=in_specs,
        out_specs=pl.BlockSpec((row_tile, pred_len), lambda i: (i, 0)),
        compiler_params=pltpu.CompilerParams(
            dimension_semantics=("parallel",),
            vmem_limit_bytes=32 * 1024 * 1024),
    )(x, *params)

    out = out[:N].reshape(B, C, pred_len)
    return jnp.transpose(out, (0, 2, 1))  # (B, pred_len, C)


if __name__ == "__main__":
    seq_len, pred_len = 32, 16
    B, C = 2, 4

    key = jax.random.PRNGKey(0)
    pkey, xkey = jax.random.split(key)
    raw = init_raw_params(pkey, seq_len, pred_len)
    params = fuse_params(raw, seq_len, pred_len)
    t = jax.random.normal(xkey, (B, C, seq_len), dtype=jnp.float32)

    out = net_forward(t, params, seq_len=seq_len, pred_len=pred_len)
    jax.block_until_ready(out)
    assert out.shape == (B, pred_len, C), out.shape

    # Verify against the unfused pure-JAX reference (bf16 matmul operands =>
    # tolerance, not bit-equality).
    ref = reference_forward(t, raw, pred_len)
    max_err = float(jnp.max(jnp.abs(out - ref)))
    assert bool(jnp.allclose(out, ref, atol=8e-2, rtol=8e-2)), max_err

    print("KERNEL_OK")
</pallas_src>

<mosaic_0001>
module attributes {stable_mosaic.version = 11 : i64} {
  func.func @net_kernel(%arg0: i32, %arg1: memref<8x32xbf16, #tpu.memory_space<vmem>>, %arg2: memref<32x72xbf16, #tpu.memory_space<vmem>>, %arg3: memref<72x76xbf16, #tpu.memory_space<vmem>>, %arg4: memref<76x16xbf16, #tpu.memory_space<vmem>>, %arg5: memref<3x76xf32, #tpu.memory_space<vmem>>, %arg6: memref<8x16xf32, #tpu.memory_space<vmem>>) attributes {dimension_semantics = [#tpu.dimension_semantics<parallel>], iteration_bounds = array<i64: 1>, scalar_prefetch = 0 : i64, scratch_operands = 0 : i64, tpu.core_type = #tpu.core_type<tc>, window_params = [{transform_indices = @transform_0, window_bounds = array<i64: 8, 32>}, {pipeline_mode = #tpu.pipeline_mode<synchronous>, transform_indices = @transform_1, window_bounds = array<i64: 32, 72>}, {pipeline_mode = #tpu.pipeline_mode<synchronous>, transform_indices = @transform_2, window_bounds = array<i64: 72, 76>}, {pipeline_mode = #tpu.pipeline_mode<synchronous>, transform_indices = @transform_3, window_bounds = array<i64: 76, 16>}, {pipeline_mode = #tpu.pipeline_mode<synchronous>, transform_indices = @transform_4, window_bounds = array<i64: 3, 76>}, {transform_indices = @transform_5, window_bounds = array<i64: 8, 16>}]} {
    %c0 = arith.constant 0 : index
    %c0_0 = arith.constant 0 : index
    %0 = vector.load %arg5[%c0, %c0_0] : memref<3x76xf32, #tpu.memory_space<vmem>>, vector<1x72xf32>
    %c1 = arith.constant 1 : index
    %c0_1 = arith.constant 0 : index
    %1 = vector.load %arg5[%c1, %c0_1] : memref<3x76xf32, #tpu.memory_space<vmem>>, vector<1x76xf32>
    %c2 = arith.constant 2 : index
    %c0_2 = arith.constant 0 : index
    %2 = vector.load %arg5[%c2, %c0_2] : memref<3x76xf32, #tpu.memory_space<vmem>>, vector<1x16xf32>
    %c0_3 = arith.constant 0 : index
    %c0_4 = arith.constant 0 : index
    %3 = vector.load %arg1[%c0_3, %c0_4] : memref<8x32xbf16, #tpu.memory_space<vmem>>, vector<8x32xbf16>
    %c0_5 = arith.constant 0 : index
    %c0_6 = arith.constant 0 : index
    %4 = vector.load %arg2[%c0_5, %c0_6] : memref<32x72xbf16, #tpu.memory_space<vmem>>, vector<32x72xbf16>
    %cst = arith.constant dense<0.000000e+00> : vector<8x72xf32>
    %5 = tpu.matmul %3, %4, %cst {dimension_numbers = #tpu.dot_dimension_numbers<[1], [0], [0], [1], [0, 0, 1, 1], [], []>} : vector<8x32xbf16>, vector<32x72xbf16>, vector<8x72xf32> -> vector<8x72xf32>
    %6 = vector.broadcast %0 : vector<1x72xf32> to vector<8x72xf32>
    %7 = arith.addf %5, %6 : vector<8x72xf32>
    %8 = vector.extract_strided_slice %7 {offsets = [0, 0], sizes = [8, 32], strides = [1, 1]} : vector<8x72xf32> to vector<8x32xf32>
    %cst_7 = arith.constant dense<0.000000e+00> : vector<8xf32>
    %9 = vector.multi_reduction <add>, %8, %cst_7 [1] : vector<8x32xf32> to vector<8xf32>
    %10 = vector.shape_cast %9 : vector<8xf32> to vector<8x1xf32>
    %cst_8 = arith.constant 3.200000e+01 : f32
    %11 = vector.broadcast %cst_8 : f32 to vector<8x1xf32>
    %12 = arith.divf %10, %11 : vector<8x1xf32>
    %13 = arith.mulf %8, %8 : vector<8x32xf32>
    %cst_9 = arith.constant dense<0.000000e+00> : vector<8xf32>
    %14 = vector.multi_reduction <add>, %13, %cst_9 [1] : vector<8x32xf32> to vector<8xf32>
    %15 = vector.shape_cast %14 : vector<8xf32> to vector<8x1xf32>
    %cst_10 = arith.constant 3.200000e+01 : f32
    %16 = vector.broadcast %cst_10 : f32 to vector<8x1xf32>
    %17 = arith.divf %15, %16 : vector<8x1xf32>
    %18 = arith.mulf %12, %12 : vector<8x1xf32>
    %19 = arith.subf %17, %18 : vector<8x1xf32>
    %20 = vector.broadcast %12 : vector<8x1xf32> to vector<8x32xf32>
    %21 = arith.subf %8, %20 : vector<8x32xf32>
    %cst_11 = arith.constant 9.99999974E-6 : f32
    %22 = vector.broadcast %cst_11 : f32 to vector<8x1xf32>
    %23 = arith.addf %19, %22 : vector<8x1xf32>
    %24 = math.rsqrt %23 : vector<8x1xf32>
    %25 = vector.broadcast %24 : vector<8x1xf32> to vector<8x32xf32>
    %26 = arith.mulf %21, %25 : vector<8x32xf32>
    %27 = vector.extract_strided_slice %7 {offsets = [0, 32], sizes = [8, 16], strides = [1, 1]} : vector<8x72xf32> to vector<8x16xf32>
    %cst_12 = arith.constant dense<0.000000e+00> : vector<8xf32>
    %28 = vector.multi_reduction <add>, %27, %cst_12 [1] : vector<8x16xf32> to vector<8xf32>
    %29 = vector.shape_cast %28 : vector<8xf32> to vector<8x1xf32>
    %cst_13 = arith.constant 1.600000e+01 : f32
    %30 = vector.broadcast %cst_13 : f32 to vector<8x1xf32>
    %31 = arith.divf %29, %30 : vector<8x1xf32>
    %32 = arith.mulf %27, %27 : vector<8x16xf32>
    %cst_14 = arith.constant dense<0.000000e+00> : vector<8xf32>
    %33 = vector.multi_reduction <add>, %32, %cst_14 [1] : vector<8x16xf32> to vector<8xf32>
    %34 = vector.shape_cast %33 : vector<8xf32> to vector<8x1xf32>
    %cst_15 = arith.constant 1.600000e+01 : f32
    %35 = vector.broadcast %cst_15 : f32 to vector<8x1xf32>
    %36 = arith.divf %34, %35 : vector<8x1xf32>
    %37 = arith.mulf %31, %31 : vector<8x1xf32>
    %38 = arith.subf %36, %37 : vector<8x1xf32>
    %39 = vector.broadcast %31 : vector<8x1xf32> to vector<8x16xf32>
    %40 = arith.subf %27, %39 : vector<8x16xf32>
    %cst_16 = arith.constant 9.99999974E-6 : f32
    %41 = vector.broadcast %cst_16 : f32 to vector<8x1xf32>
    %42 = arith.addf %38, %41 : vector<8x1xf32>
    %43 = math.rsqrt %42 : vector<8x1xf32>
    %44 = vector.broadcast %43 : vector<8x1xf32> to vector<8x16xf32>
    %45 = arith.mulf %40, %44 : vector<8x16xf32>
    %46 = vector.extract_strided_slice %7 {offsets = [0, 48], sizes = [8, 8], strides = [1, 1]} : vector<8x72xf32> to vector<8x8xf32>
    %cst_17 = arith.constant dense<0.000000e+00> : vector<8xf32>
    %47 = vector.multi_reduction <add>, %46, %cst_17 [1] : vector<8x8xf32> to vector<8xf32>
    %48 = vector.shape_cast %47 : vector<8xf32> to vector<8x1xf32>
    %cst_18 = arith.constant 8.000000e+00 : f32
    %49 = vector.broadcast %cst_18 : f32 to vector<8x1xf32>
    %50 = arith.divf %48, %49 : vector<8x1xf32>
    %51 = arith.mulf %46, %46 : vector<8x8xf32>
    %cst_19 = arith.constant dense<0.000000e+00> : vector<8xf32>
    %52 = vector.multi_reduction <add>, %51, %cst_19 [1] : vector<8x8xf32> to vector<8xf32>
    %53 = vector.shape_cast %52 : vector<8xf32> to vector<8x1xf32>
    %cst_20 = arith.constant 8.000000e+00 : f32
    %54 = vector.broadcast %cst_20 : f32 to vector<8x1xf32>
    %55 = arith.divf %53, %54 : vector<8x1xf32>
    %56 = arith.mulf %50, %50 : vector<8x1xf32>
    %57 = arith.subf %55, %56 : vector<8x1xf32>
    %58 = vector.broadcast %50 : vector<8x1xf32> to vector<8x8xf32>
    %59 = arith.subf %46, %58 : vector<8x8xf32>
    %cst_21 = arith.constant 9.99999974E-6 : f32
    %60 = vector.broadcast %cst_21 : f32 to vector<8x1xf32>
    %61 = arith.addf %57, %60 : vector<8x1xf32>
    %62 = math.rsqrt %61 : vector<8x1xf32>
    %63 = vector.broadcast %62 : vector<8x1xf32> to vector<8x8xf32>
    %64 = arith.mulf %59, %63 : vector<8x8xf32>
    %65 = vector.extract_strided_slice %7 {offsets = [0, 56], sizes = [8, 16], strides = [1, 1]} : vector<8x72xf32> to vector<8x16xf32>
    %cst_22 = arith.constant dense<0.000000e+00> : vector<8xf32>
    %66 = vector.multi_reduction <add>, %65, %cst_22 [1] : vector<8x16xf32> to vector<8xf32>
    %67 = vector.shape_cast %66 : vector<8xf32> to vector<8x1xf32>
    %cst_23 = arith.constant 1.600000e+01 : f32
    %68 = vector.broadcast %cst_23 : f32 to vector<8x1xf32>
    %69 = arith.divf %67, %68 : vector<8x1xf32>
    %70 = arith.mulf %65, %65 : vector<8x16xf32>
    %cst_24 = arith.constant dense<0.000000e+00> : vector<8xf32>
    %71 = vector.multi_reduction <add>, %70, %cst_24 [1] : vector<8x16xf32> to vector<8xf32>
    %72 = vector.shape_cast %71 : vector<8xf32> to vector<8x1xf32>
    %cst_25 = arith.constant 1.600000e+01 : f32
    %73 = vector.broadcast %cst_25 : f32 to vector<8x1xf32>
    %74 = arith.divf %72, %73 : vector<8x1xf32>
    %75 = arith.mulf %69, %69 : vector<8x1xf32>
    %76 = arith.subf %74, %75 : vector<8x1xf32>
    %77 = vector.broadcast %69 : vector<8x1xf32> to vector<8x16xf32>
    %78 = arith.subf %65, %77 : vector<8x16xf32>
    %cst_26 = arith.constant 9.99999974E-6 : f32
    %79 = vector.broadcast %cst_26 : f32 to vector<8x1xf32>
    %80 = arith.addf %76, %79 : vector<8x1xf32>
    %81 = math.rsqrt %80 : vector<8x1xf32>
    %82 = vector.broadcast %81 : vector<8x1xf32> to vector<8x16xf32>
    %83 = arith.mulf %78, %82 : vector<8x16xf32>
    %84 = tpu.concatenate %26, %45, %64, %83 in 1 : vector<8x32xf32>, vector<8x16xf32>, vector<8x8xf32>, vector<8x16xf32> -> vector<8x72xf32>
    %85 = arith.truncf %84 : vector<8x72xf32> to vector<8x72xbf16>
    %c0_27 = arith.constant 0 : index
    %c0_28 = arith.constant 0 : index
    %86 = vector.load %arg3[%c0_27, %c0_28] : memref<72x76xbf16, #tpu.memory_space<vmem>>, vector<72x76xbf16>
    %cst_29 = arith.constant dense<0.000000e+00> : vector<8x76xf32>
    %87 = tpu.matmul %85, %86, %cst_29 {dimension_numbers = #tpu.dot_dimension_numbers<[1], [0], [0], [1], [0, 0, 1, 1], [], []>} : vector<8x72xbf16>, vector<72x76xbf16>, vector<8x76xf32> -> vector<8x76xf32>
    %88 = vector.broadcast %1 : vector<1x76xf32> to vector<8x76xf32>
    %89 = arith.addf %87, %88 : vector<8x76xf32>
    %90 = vector.extract_strided_slice %89 {offsets = [0, 0], sizes = [8, 8], strides = [1, 1]} : vector<8x76xf32> to vector<8x8xf32>
    %cst_30 = arith.constant dense<0.000000e+00> : vector<8xf32>
    %91 = vector.multi_reduction <add>, %90, %cst_30 [1] : vector<8x8xf32> to vector<8xf32>
    %92 = vector.shape_cast %91 : vector<8xf32> to vector<8x1xf32>
    %cst_31 = arith.constant 8.000000e+00 : f32
    %93 = vector.broadcast %cst_31 : f32 to vector<8x1xf32>
    %94 = arith.divf %92, %93 : vector<8x1xf32>
    %95 = arith.mulf %90, %90 : vector<8x8xf32>
    %cst_32 = arith.constant dense<0.000000e+00> : vector<8xf32>
    %96 = vector.multi_reduction <add>, %95, %cst_32 [1] : vector<8x8xf32> to vector<8xf32>
    %97 = vector.shape_cast %96 : vector<8xf32> to vector<8x1xf32>
    %cst_33 = arith.constant 8.000000e+00 : f32
    %98 = vector.broadcast %cst_33 : f32 to vector<8x1xf32>
    %99 = arith.divf %97, %98 : vector<8x1xf32>
    %100 = arith.mulf %94, %94 : vector<8x1xf32>
    %101 = arith.subf %99, %100 : vector<8x1xf32>
    %102 = vector.broadcast %94 : vector<8x1xf32> to vector<8x8xf32>
    %103 = arith.subf %90, %102 : vector<8x8xf32>
    %cst_34 = arith.constant 9.99999974E-6 : f32
    %104 = vector.broadcast %cst_34 : f32 to vector<8x1xf32>
    %105 = arith.addf %101, %104 : vector<8x1xf32>
    %106 = math.rsqrt %105 : vector<8x1xf32>
    %107 = vector.broadcast %106 : vector<8x1xf32> to vector<8x8xf32>
    %108 = arith.mulf %103, %107 : vector<8x8xf32>
    %109 = vector.extract_strided_slice %89 {offsets = [0, 8], sizes = [8, 4], strides = [1, 1]} : vector<8x76xf32> to vector<8x4xf32>
    %cst_35 = arith.constant dense<0.000000e+00> : vector<8xf32>
    %110 = vector.multi_reduction <add>, %109, %cst_35 [1] : vector<8x4xf32> to vector<8xf32>
    %111 = vector.shape_cast %110 : vector<8xf32> to vector<8x1xf32>
    %cst_36 = arith.constant 4.000000e+00 : f32
    %112 = vector.broadcast %cst_36 : f32 to vector<8x1xf32>
    %113 = arith.divf %111, %112 : vector<8x1xf32>
    %114 = arith.mulf %109, %109 : vector<8x4xf32>
    %cst_37 = arith.constant dense<0.000000e+00> : vector<8xf32>
    %115 = vector.multi_reduction <add>, %114, %cst_37 [1] : vector<8x4xf32> to vector<8xf32>
    %116 = vector.shape_cast %115 : vector<8xf32> to vector<8x1xf32>
    %cst_38 = arith.constant 4.000000e+00 : f32
    %117 = vector.broadcast %cst_38 : f32 to vector<8x1xf32>
    %118 = arith.divf %116, %117 : vector<8x1xf32>
    %119 = arith.mulf %113, %113 : vector<8x1xf32>
    %120 = arith.subf %118, %119 : vector<8x1xf32>
    %121 = vector.broadcast %113 : vector<8x1xf32> to vector<8x4xf32>
    %122 = arith.subf %109, %121 : vector<8x4xf32>
    %cst_39 = arith.constant 9.99999974E-6 : f32
    %123 = vector.broadcast %cst_39 : f32 to vector<8x1xf32>
    %124 = arith.addf %120, %123 : vector<8x1xf32>
    %125 = math.rsqrt %124 : vector<8x1xf32>
    %126 = vector.broadcast %125 : vector<8x1xf32> to vector<8x4xf32>
    %127 = arith.mulf %122, %126 : vector<8x4xf32>
    %128 = vector.extract_strided_slice %89 {offsets = [0, 12], sizes = [8, 32], strides = [1, 1]} : vector<8x76xf32> to vector<8x32xf32>
    %cst_40 = arith.constant dense<0.000000e+00> : vector<8xf32>
    %129 = vector.multi_reduction <add>, %128, %cst_40 [1] : vector<8x32xf32> to vector<8xf32>
    %130 = vector.shape_cast %129 : vector<8xf32> to vector<8x1xf32>
    %cst_41 = arith.constant 3.200000e+01 : f32
    %131 = vector.broadcast %cst_41 : f32 to vector<8x1xf32>
    %132 = arith.divf %130, %131 : vector<8x1xf32>
    %133 = arith.mulf %128, %128 : vector<8x32xf32>
    %cst_42 = arith.constant dense<0.000000e+00> : vector<8xf32>
    %134 = vector.multi_reduction <add>, %133, %cst_42 [1] : vector<8x32xf32> to vector<8xf32>
    %135 = vector.shape_cast %134 : vector<8xf32> to vector<8x1xf32>
    %cst_43 = arith.constant 3.200000e+01 : f32
    %136 = vector.broadcast %cst_43 : f32 to vector<8x1xf32>
    %137 = arith.divf %135, %136 : vector<8x1xf32>
    %138 = arith.mulf %132, %132 : vector<8x1xf32>
    %139 = arith.subf %137, %138 : vector<8x1xf32>
    %140 = vector.broadcast %132 : vector<8x1xf32> to vector<8x32xf32>
    %141 = arith.subf %128, %140 : vector<8x32xf32>
    %cst_44 = arith.constant 9.99999974E-6 : f32
    %142 = vector.broadcast %cst_44 : f32 to vector<8x1xf32>
    %143 = arith.addf %139, %142 : vector<8x1xf32>
    %144 = math.rsqrt %143 : vector<8x1xf32>
    %145 = vector.broadcast %144 : vector<8x1xf32> to vector<8x32xf32>
    %146 = arith.mulf %141, %145 : vector<8x32xf32>
    %147 = vector.extract_strided_slice %89 {offsets = [0, 44], sizes = [8, 32], strides = [1, 1]} : vector<8x76xf32> to vector<8x32xf32>
    %cst_45 = arith.constant dense<0.000000e+00> : vector<8xf32>
    %148 = vector.multi_reduction <add>, %147, %cst_45 [1] : vector<8x32xf32> to vector<8xf32>
    %149 = vector.shape_cast %148 : vector<8xf32> to vector<8x1xf32>
    %cst_46 = arith.constant 3.200000e+01 : f32
    %150 = vector.broadcast %cst_46 : f32 to vector<8x1xf32>
    %151 = arith.divf %149, %150 : vector<8x1xf32>
    %152 = arith.mulf %147, %147 : vector<8x32xf32>
    %cst_47 = arith.constant dense<0.000000e+00> : vector<8xf32>
    %153 = vector.multi_reduction <add>, %152, %cst_47 [1] : vector<8x32xf32> to vector<8xf32>
    %154 = vector.shape_cast %153 : vector<8xf32> to vector<8x1xf32>
    %cst_48 = arith.constant 3.200000e+01 : f32
    %155 = vector.broadcast %cst_48 : f32 to vector<8x1xf32>
    %156 = arith.divf %154, %155 : vector<8x1xf32>
    %157 = arith.mulf %151, %151 : vector<8x1xf32>
    %158 = arith.subf %156, %157 : vector<8x1xf32>
    %159 = vector.broadcast %151 : vector<8x1xf32> to vector<8x32xf32>
    %160 = arith.subf %147, %159 : vector<8x32xf32>
    %cst_49 = arith.constant 9.99999974E-6 : f32
    %161 = vector.broadcast %cst_49 : f32 to vector<8x1xf32>
    %162 = arith.addf %158, %161 : vector<8x1xf32>
    %163 = math.rsqrt %162 : vector<8x1xf32>
    %164 = vector.broadcast %163 : vector<8x1xf32> to vector<8x32xf32>
    %165 = arith.mulf %160, %164 : vector<8x32xf32>
    %166 = tpu.concatenate %108, %127, %146, %165 in 1 : vector<8x8xf32>, vector<8x4xf32>, vector<8x32xf32>, vector<8x32xf32> -> vector<8x76xf32>
    %167 = arith.truncf %166 : vector<8x76xf32> to vector<8x76xbf16>
    %c0_50 = arith.constant 0 : index
    %c0_51 = arith.constant 0 : index
    %168 = vector.load %arg4[%c0_50, %c0_51] : memref<76x16xbf16, #tpu.memory_space<vmem>>, vector<76x16xbf16>
    %cst_52 = arith.constant dense<0.000000e+00> : vector<8x16xf32>
    %169 = tpu.matmul %167, %168, %cst_52 {dimension_numbers = #tpu.dot_dimension_numbers<[1], [0], [0], [1], [0, 0, 1, 1], [], []>} : vector<8x76xbf16>, vector<76x16xbf16>, vector<8x16xf32> -> vector<8x16xf32>
    %170 = vector.broadcast %2 : vector<1x16xf32> to vector<8x16xf32>
    %171 = arith.addf %169, %170 : vector<8x16xf32>
    %c0_53 = arith.constant 0 : index
    %c0_54 = arith.constant 0 : index
    %172 = vector.load %arg6[%c0_53, %c0_54] : memref<8x16xf32, #tpu.memory_space<vmem>>, vector<8x16xf32>
    tpu.vector_store %arg6[%c0_53, %c0_54], %171 {strides = array<i32>} : memref<8x16xf32, #tpu.memory_space<vmem>>, vector<8x16xf32>,
    return
  }
  func.func @transform_0(%arg0: i32) -> (i32, i32) {
    %c0_i32 = arith.constant 0 : i32
    %c0_i32_0 = arith.constant 0 : i32
    return %arg0, %c0_i32 : i32, i32
  }
  func.func @transform_1(%arg0: i32) -> (i32, i32) {
    %c0_i32 = arith.constant 0 : i32
    %c0_i32_0 = arith.constant 0 : i32
    %c0_i32_1 = arith.constant 0 : i32
    return %c0_i32, %c0_i32_0 : i32, i32
  }
  func.func @transform_2(%arg0: i32) -> (i32, i32) {
    %c0_i32 = arith.constant 0 : i32
    %c0_i32_0 = arith.constant 0 : i32
    %c0_i32_1 = arith.constant 0 : i32
    return %c0_i32, %c0_i32_0 : i32, i32
  }
  func.func @transform_3(%arg0: i32) -> (i32, i32) {
    %c0_i32 = arith.constant 0 : i32
    %c0_i32_0 = arith.constant 0 : i32
    %c0_i32_1 = arith.constant 0 : i32
    return %c0_i32, %c0_i32_0 : i32, i32
  }
  func.func @transform_4(%arg0: i32) -> (i32, i32) {
    %c0_i32 = arith.constant 0 : i32
    %c0_i32_0 = arith.constant 0 : i32
    %c0_i32_1 = arith.constant 0 : i32
    return %c0_i32, %c0_i32_0 : i32, i32
  }
  func.func @transform_5(%arg0: i32) -> (i32, i32) {
    %c0_i32 = arith.constant 0 : i32
    %c0_i32_0 = arith.constant 0 : i32
    return %arg0, %c0_i32 : i32, i32
  }
}

</mosaic_0001>

<llo_original>
// kernel: tpu_custom_call.1
$region0: #{tpu_custom_call.1}
  #allocation0 [shape = 'u32[]', space=smem, size = 0x4, offset = 0x4, fixed_abs, tag = 'smem constant byte address 0x4 - core index']
  #allocation1 [shape = 'u32[72,128]{1,0:T(1,128)}', space=vmem, size = 0x9000, scoped, tag = 'internal scratch']
  %s0 = inlined_call_operand.vmem [shape: bf16[8,32], index: 0, kind: input, shape index: {}]
  %s1 = inlined_call_operand.hbm [shape: bf16[32,72], index: 1, kind: input, shape index: {}]
  %s2 = inlined_call_operand.vmem [shape: bf16[72,76], index: 2, kind: input, shape index: {}]
  %s3 = inlined_call_operand.vmem [shape: bf16[76,16], index: 3, kind: input, shape index: {}]
  %s4 = inlined_call_operand.vmem [shape: f32[3,76], index: 4, kind: input, shape index: {}]
  %s5 = inlined_call_operand.hbm [shape: f32[8,16], index: 5, kind: output, shape index: {}]
  %s6 = sld [smem:[#allocation0]]
  $region34: #{tpu_custom_call.1} parent=0
    _
  %s8 = ssub.s32 1, %s6
  %s9 = scalar_select 0, %s8, %s6
  $region1: #{tpu_custom_call.1} parent=0
    #allocation2 [shape = 'u8[8192]{0}', space=vmem, size = 0x2000, scoped, tag = 'input window, operand 1, single buffered']
    #allocation3 [shape = 's32[1]{0}', space=sflag, size = 0x4, scoped, tag = 'scoped memory for tpu_custom_call.1']
    #allocation4 [shape = 's32[1]{0}', space=sflag, size = 0x4, scoped, tag = 'scoped memory for tpu_custom_call.1']
    #allocation5 [shape = 'u8[4096]{0}', space=vmem, size = 0x1000, scoped, tag = 'output window, operand 0, single buffered']
    %10 = vsyncpa [#allocation3], 0
    %11 = vsyncpa [#allocation4], 0
    // Predicated region
    $region2: #{tpu_custom_call.1} parent=1 // pred_check
      _
    $region3: #{tpu_custom_call.1} parent=1 // pred_check_branch
      %13 = sbr.rel (0) target = $region5
    $region4: #{tpu_custom_call.1} parent=1 // pred_region
      _
    $region5: #{tpu_custom_call.1} parent=1 // pred_fallthru
      _
    // Predicated region
    $region6: #{tpu_custom_call.1} parent=1 // pred_check
      _
    $region7: #{tpu_custom_call.1} parent=1 // pred_check_branch
      %15 = sbr.rel (0) target = $region9
    $region8: #{tpu_custom_call.1} parent=1 // pred_region
      %17 = vsyncadd [#allocation3], 0
      %s18 = sshll.u32 %s1, 4
      %s19 = int_to_ptr.hbm [resolvable:$true] %s18
      %s20 = sshll.u32 [#allocation2], 4
      %s21 = int_to_ptr.vmem [resolvable:$true] %s20
      %26 = dma.hbm_to_vmem [thread:$0]  %s19, 256, %s21, [#allocation3], 64, 64, 4
    $region9: #{tpu_custom_call.1} parent=1 // pred_fallthru
      _
    // Predicated region
    $region10: #{tpu_custom_call.1} parent=1 // pred_check
      _
    $region11: #{tpu_custom_call.1} parent=1 // pred_check_branch
      %28 = sbr.rel (0) target = $region13
    $region12: #{tpu_custom_call.1} parent=1 // pred_region
      _
    $region13: #{tpu_custom_call.1} parent=1 // pred_fallthru
      _
    // Predicated region
    $region14: #{tpu_custom_call.1} parent=1 // pred_check
      _
    $region15: #{tpu_custom_call.1} parent=1 // pred_check_branch
      %30 = sbr.rel (0) target = $region17
    $region16: #{tpu_custom_call.1} parent=1 // pred_region
      _
    $region17: #{tpu_custom_call.1} parent=1 // pred_fallthru
      _
    // Predicated region
    $region18: #{tpu_custom_call.1} parent=1 // pred_check
      _
    $region19: #{tpu_custom_call.1} parent=1 // pred_check_branch
      %32 = sbr.rel (0) target = $region21
    $region20: #{tpu_custom_call.1} parent=1 // pred_region
      _
    $region21: #{tpu_custom_call.1} parent=1 // pred_fallthru
      _
    // Predicated region
    $region22: #{tpu_custom_call.1} parent=1 // pred_check
      _
    $region23: #{tpu_custom_call.1} parent=1 // pred_check_branch
      %34 = sbr.rel (0) target = $region25
    $region24: #{tpu_custom_call.1} parent=1 // pred_region
      %36 = dma.done [#allocation3], 256
    $region25: #{tpu_custom_call.1} parent=1 // pred_fallthru
      _
    %v38 = vld [vmem:[%s4] sm:$0x1]
    %v39 = vld [vmem:[%s4 + $0x1] sm:$0x1]
    %v40 = vld [vmem:[%s4 + $0x2] sm:$0x1]
    %v41 = vld [vmem:[%s0] sm:$0xf]
    %v42 = vld [vmem:[#allocation2] sm:$0xf]
    %v43 = vld [vmem:[#allocation2 + $0x4] sm:$0xf]
    %v44 = vld [vmem:[#allocation2 + $0x8] sm:$0xf]
    %v45 = vld [vmem:[#allocation2 + $0xc] sm:$0xf]
    %v46 = vperm.slane %v38, 0
    %v51 = vunpack.c.l.b16 %v42
    %v52 = vunpack.c.l.b16 %v43
    %v53 = vunpack.c.l.b16 %v44
    %v54 = vunpack.c.l.b16 %v45
    %v55 = vpack.c.b16 %v52, %v51
    %v56 = vpack.c.b16 %v54, %v53
    %vm59 = vcmask 261120
    %v61 = vsel %vm59, %v41, 0
    %63 = vmatpush.bf16.msra.mxu0 0
    %64 = vmatpush.bf16.msra.mxu0 0
    %65 = vmatpush.bf16.msra.mxu0 0
    %66 = vmatpush.bf16.msra.mxu0 0
    %67 = vmatpush.bf16.msra.mxu0 0
    %68 = vmatpush.bf16.msra.mxu0 0
    %69 = vmatpush.bf16.msra.mxu0 %v56
    %70 = vmatpush.bf16.msra.mxu0 %v55
    %71 = vmatmul.bf16.gmra.mxu0 %v61
    %v72 = vpop.f32.mrf.mxu0
    %v73 = vadd.f32 %v46, %v72
    %v74 = vpop.f32.mrf.mxu0
    %75 = vdwg.mxu0
    %v76 = vsel %vm59, %v73, 0.0
    %77 = vadd.xlane.f32.xlu0 %v76
    %v78 = vpop.xlane.xlu0 %77
    %v79 = vrcp.pop 32.0
    %v80 = vmul.f32 32.0, %v79
    %v81 = vsub.f32 1.0, %v80
    %v82 = vmul.f32 %v79, %v81
    %v83 = vadd.f32 %v79, %v82
    %vm84 = vweird.f32 %v79
    %v85 = vsel %vm84, %v79, %v83
    %v86 = vmul.f32 %v78, %v85
    %v87 = vmul.f32 %v73, %v73
    %v88 = vsel %vm59, %v87, 0.0
    %89 = vadd.xlane.f32.xlu0 %v88
    %v90 = vpop.xlane.xlu0 %89
    %v91 = vmul.f32 %v90, %v85
    %v92 = vmul.f32 %v86, %v86
    %v93 = vsub.f32 %v91, %v92
    %v94 = vsub.f32 %v73, %v86
    %v95 = vadd.f32 %v93, 1e-05
    %v96 = vrsqrt.pop %v95
    %v97 = vmul.f32 %v96, %v95
    %v98 = vmul.f32 %v97, %v96
    %v99 = vmul.f32 0.5, %v98
    %v100 = vsub.f32 1.5, %v99
    %v101 = vmul.f32 %v96, %v100
    %vm102 = vweird.f32 %v95
    %vm103 = vweird.f32 %v96
    %vm104 = vmor %vm102, %vm103
    %v105 = vsel %vm104, %v96, %v101
    %v106 = vmul.f32 %v94, %v105
    %108 = vrot.lane.b32.xlu0 %v73, 96
    %v109 = vpop.permute.xlu0 %108
    %vm111 = vcmask 130048
    %v112 = vsel %vm111, %v109, 0.0
    %113 = vadd.xlane.f32.xlu0 %v112
    %v114 = vpop.xlane.xlu0 %113
    %v115 = vrcp.pop 16.0
    %v116 = vmul.f32 16.0, %v115
    %v117 = vsub.f32 1.0, %v116
    %v118 = vmul.f32 %v115, %v117
    %v119 = vadd.f32 %v115, %v118
    %vm120 = vweird.f32 %v115
    %v121 = vsel %vm120, %v115, %v119
    %v122 = vmul.f32 %v114, %v121
    %124 = vrot.lane.b32.xlu0 %v87, 96
    %v125 = vpop.permute.xlu0 %124
    %v127 = vsel %vm111, %v125, 0.0
    %128 = vadd.xlane.f32.xlu0 %v127
    %v129 = vpop.xlane.xlu0 %128
    %v130 = vmul.f32 %v129, %v121
    %v131 = vmul.f32 %v122, %v122
    %v132 = vsub.f32 %v130, %v131
    %v133 = vsub.f32 %v73, %v122
    %v134 = vadd.f32 %v132, 1e-05
    %v135 = vrsqrt.pop %v134
    %v136 = vmul.f32 %v135, %v134
    %v137 = vmul.f32 %v136, %v135
    %v138 = vmul.f32 0.5, %v137
    %v139 = vsub.f32 1.5, %v138
    %v140 = vmul.f32 %v135, %v139
    %vm141 = vweird.f32 %v134
    %vm142 = vweird.f32 %v135
    %vm143 = vmor %vm141, %vm142
    %v144 = vsel %vm143, %v135, %v140
    %v145 = vmul.f32 %v133, %v144
    %146 = vrot.lane.b32.xlu0 %v73, 80
    %v147 = vpop.permute.xlu0 %146
    %vm149 = vcmask 64512
    %v150 = vsel %vm149, %v147, 0.0
    %151 = vadd.xlane.f32.xlu0 %v150
    %v152 = vpop.xlane.xlu0 %151
    %v153 = vrcp.pop 8.0
    %v154 = vmul.f32 8.0, %v153
    %v155 = vsub.f32 1.0, %v154
    %v156 = vmul.f32 %v153, %v155
    %v157 = vadd.f32 %v153, %v156
    %vm158 = vweird.f32 %v153
    %v159 = vsel %vm158, %v153, %v157
    %v160 = vmul.f32 %v152, %v159
    %161 = vrot.lane.b32.xlu0 %v87, 80
    %v162 = vpop.permute.xlu0 %161
    %v164 = vsel %vm149, %v162, 0.0
    %165 = vadd.xlane.f32.xlu0 %v164
    %v166 = vpop.xlane.xlu0 %165
    %v167 = vmul.f32 %v166, %v159
    %v168 = vmul.f32 %v160, %v160
    %v169 = vsub.f32 %v167, %v168
    %v170 = vsub.f32 %v73, %v160
    %v171 = vadd.f32 %v169, 1e-05
    %v172 = vrsqrt.pop %v171
    %v173 = vmul.f32 %v172, %v171
    %v174 = vmul.f32 %v173, %v172
    %v175 = vmul.f32 0.5, %v174
    %v176 = vsub.f32 1.5, %v175
    %v177 = vmul.f32 %v172, %v176
    %vm178 = vweird.f32 %v171
    %vm179 = vweird.f32 %v172
    %vm180 = vmor %vm178, %vm179
    %v181 = vsel %vm180, %v172, %v177
    %v182 = vmul.f32 %v170, %v181
    %183 = vrot.lane.b32.xlu0 %v73, 72
    %v184 = vpop.permute.xlu0 %183
    %v186 = vsel %vm111, %v184, 0.0
    %187 = vadd.xlane.f32.xlu0 %v186
    %v188 = vpop.xlane.xlu0 %187
    %v189 = vmul.f32 %v188, %v121
    %190 = vrot.lane.b32.xlu0 %v87, 72
    %v191 = vpop.permute.xlu0 %190
    %v193 = vsel %vm111, %v191, 0.0
    %194 = vadd.xlane.f32.xlu0 %v193
    %v195 = vpop.xlane.xlu0 %194
    %v196 = vmul.f32 %v195, %v121
    %v197 = vmul.f32 %v189, %v189
    %v198 = vsub.f32 %v196, %v197
    %v199 = vsub.f32 %v73, %v189
    %v200 = vadd.f32 %v198, 1e-05
    %v201 = vrsqrt.pop %v200
    %v202 = vmul.f32 %v201, %v200
    %v203 = vmul.f32 %v202, %v201
    %v204 = vmul.f32 0.5, %v203
    %v205 = vsub.f32 1.5, %v204
    %v206 = vmul.f32 %v201, %v205
    %vm207 = vweird.f32 %v200
    %vm208 = vweird.f32 %v201
    %vm209 = vmor %vm207, %vm208
    %v210 = vsel %vm209, %v201, %v206
    %v211 = vmul.f32 %v199, %v210
    %v212 = vsel %vm59, %v106, %v145
    %vm213 = vcmask 392192
    %v214 = vsel %vm213, %v212, %v182
    %vm215 = vcmask 457728
    %v216 = vsel %vm215, %v214, %v211
    %v217 = vpack.c.bf16 %v216, %v216
    %v218 = vld [vmem:[%s2] sm:$0xf]
    %v219 = vld [vmem:[%s2 + $0x4] sm:$0xf]
    %v220 = vld [vmem:[%s2 + $0x8] sm:$0xf]
    %v221 = vld [vmem:[%s2 + $0xc] sm:$0xf]
    %v222 = vld [vmem:[%s2 + $0x10] sm:$0xf]
    %v223 = vld [vmem:[%s2 + $0x14] sm:$0xf]
    %v224 = vld [vmem:[%s2 + $0x18] sm:$0xf]
    %v225 = vld [vmem:[%s2 + $0x1c] sm:$0xf]
    %v226 = vld [vmem:[%s2 + $0x20] sm:$0xf]
    %v227 = vperm.slane %v39, 0
    %v237 = vunpack.c.l.b16 %v218
    %v238 = vunpack.c.l.b16 %v219
    %v239 = vunpack.c.l.b16 %v220
    %v240 = vunpack.c.l.b16 %v221
    %v241 = vunpack.c.l.b16 %v222
    %v242 = vunpack.c.l.b16 %v223
    %v243 = vunpack.c.l.b16 %v224
    %v244 = vunpack.c.l.b16 %v225
    %v245 = vunpack.c.l.b16 %v226
    %v246 = vpack.c.b16 %v238, %v237
    %v247 = vpack.c.b16 %v240, %v239
    %v248 = vpack.c.b16 %v242, %v241
    %v249 = vpack.c.b16 %v244, %v243
    %v250 = vpack.c.b16 %v245, %v245
    %vm255 = vcmask 588800
    %v257 = vsel %vm255, %v217, 0
    %vm259 = vcmask 1043456
    %v261 = vsel %vm259, %v250, 0
    %263 = vmatpush.bf16.msra.mxu0 0
    %264 = vmatpush.bf16.msra.mxu0 0
    %265 = vmatpush.bf16.msra.mxu0 0
    %266 = vmatpush.bf16.msra.mxu0 %v261
    %267 = vmatpush.bf16.msra.mxu0 %v249
    %268 = vmatpush.bf16.msra.mxu0 %v248
    %269 = vmatpush.bf16.msra.mxu0 %v247
    %270 = vmatpush.bf16.msra.mxu0 %v246
    %271 = vmatmul.bf16.gmra.mxu0 %v257
    %v272 = vpop.f32.mrf.mxu0
    %v273 = vadd.f32 %v227, %v272
    %v274 = vpop.f32.mrf.mxu0
    %275 = vdwg.mxu0
    %v276 = vsel %vm149, %v273, 0.0
    %277 = vadd.xlane.f32.xlu0 %v276
    %v278 = vpop.xlane.xlu0 %277
    %v279 = vmul.f32 %v278, %v159
    %v280 = vmul.f32 %v273, %v273
    %v281 = vsel %vm149, %v280, 0.0
    %282 = vadd.xlane.f32.xlu0 %v281
    %v283 = vpop.xlane.xlu0 %282
    %v284 = vmul.f32 %v283, %v159
    %v285 = vmul.f32 %v279, %v279
    %v286 = vsub.f32 %v284, %v285
    %v287 = vsub.f32 %v273, %v279
    %v288 = vadd.f32 %v286, 1e-05
    %v289 = vrsqrt.pop %v288
    %v290 = vmul.f32 %v289, %v288
    %v291 = vmul.f32 %v290, %v289
    %v292 = vmul.f32 0.5, %v291
    %v293 = vsub.f32 1.5, %v292
    %v294 = vmul.f32 %v289, %v293
    %vm295 = vweird.f32 %v288
    %vm296 = vweird.f32 %v289
    %vm297 = vmor %vm295, %vm296
    %v298 = vsel %vm297, %v289, %v294
    %v299 = vmul.f32 %v287, %v298
    %301 = vrot.lane.b32.xlu0 %v273, 120
    %v302 = vpop.permute.xlu0 %301
    %vm304 = vcmask 31744
    %v305 = vsel %vm304, %v302, 0.0
    %306 = vadd.xlane.f32.xlu0 %v305
    %v307 = vpop.xlane.xlu0 %306
    %v308 = vrcp.pop 4.0
    %v309 = vmul.f32 4.0, %v308
    %v310 = vsub.f32 1.0, %v309
    %v311 = vmul.f32 %v308, %v310
    %v312 = vadd.f32 %v308, %v311
    %vm313 = vweird.f32 %v308
    %v314 = vsel %vm313, %v308, %v312
    %v315 = vmul.f32 %v307, %v314
    %317 = vrot.lane.b32.xlu0 %v280, 120
    %v318 = vpop.permute.xlu0 %317
    %v320 = vsel %vm304, %v318, 0.0
    %321 = vadd.xlane.f32.xlu0 %v320
    %v322 = vpop.xlane.xlu0 %321
    %v323 = vmul.f32 %v322, %v314
    %v324 = vmul.f32 %v315, %v315
    %v325 = vsub.f32 %v323, %v324
    %v326 = vsub.f32 %v273, %v315
    %v327 = vadd.f32 %v325, 1e-05
    %v328 = vrsqrt.pop %v327
    %v329 = vmul.f32 %v328, %v327
    %v330 = vmul.f32 %v329, %v328
    %v331 = vmul.f32 0.5, %v330
    %v332 = vsub.f32 1.5, %v331
    %v333 = vmul.f32 %v328, %v332
    %vm334 = vweird.f32 %v327
    %vm335 = vweird.f32 %v328
    %vm336 = vmor %vm334, %vm335
    %v337 = vsel %vm336, %v328, %v333
    %v338 = vmul.f32 %v326, %v337
    %339 = vrot.lane.b32.xlu0 %v273, 116
    %v340 = vpop.permute.xlu0 %339
    %v342 = vsel %vm59, %v340, 0.0
    %343 = vadd.xlane.f32.xlu0 %v342
    %v344 = vpop.xlane.xlu0 %343
    %v345 = vmul.f32 %v344, %v85
    %346 = vrot.lane.b32.xlu0 %v280, 116
    %v347 = vpop.permute.xlu0 %346
    %v349 = vsel %vm59, %v347, 0.0
    %350 = vadd.xlane.f32.xlu0 %v349
    %v351 = vpop.xlane.xlu0 %350
    %v352 = vmul.f32 %v351, %v85
    %v353 = vmul.f32 %v345, %v345
    %v354 = vsub.f32 %v352, %v353
    %v355 = vsub.f32 %v273, %v345
    %v356 = vadd.f32 %v354, 1e-05
    %v357 = vrsqrt.pop %v356
    %v358 = vmul.f32 %v357, %v356
    %v359 = vmul.f32 %v358, %v357
    %v360 = vmul.f32 0.5, %v359
    %v361 = vsub.f32 1.5, %v360
    %v362 = vmul.f32 %v357, %v361
    %vm363 = vweird.f32 %v356
    %vm364 = vweird.f32 %v357
    %vm365 = vmor %vm363, %vm364
    %v366 = vsel %vm365, %v357, %v362
    %v367 = vmul.f32 %v355, %v366
    %368 = vrot.lane.b32.xlu0 %v273, 84
    %v369 = vpop.permute.xlu0 %368
    %v371 = vsel %vm59, %v369, 0.0
    %372 = vadd.xlane.f32.xlu0 %v371
    %v373 = vpop.xlane.xlu0 %372
    %v374 = vmul.f32 %v373, %v85
    %375 = vrot.lane.b32.xlu0 %v280, 84
    %v376 = vpop.permute.xlu0 %375
    %v378 = vsel %vm59, %v376, 0.0
    %379 = vadd.xlane.f32.xlu0 %v378
    %v380 = vpop.xlane.xlu0 %379
    %v381 = vmul.f32 %v380, %v85
    %v382 = vmul.f32 %v374, %v374
    %v383 = vsub.f32 %v381, %v382
    %v384 = vsub.f32 %v273, %v374
    %v385 = vadd.f32 %v383, 1e-05
    %v386 = vrsqrt.pop %v385
    %v387 = vmul.f32 %v386, %v385
    %v388 = vmul.f32 %v387, %v386
    %v389 = vmul.f32 0.5, %v388
    %v390 = vsub.f32 1.5, %v389
    %v391 = vmul.f32 %v386, %v390
    %vm392 = vweird.f32 %v385
    %vm393 = vweird.f32 %v386
    %vm394 = vmor %vm392, %vm393
    %v395 = vsel %vm394, %v386, %v391
    %v396 = vmul.f32 %v384, %v395
    %v397 = vsel %vm149, %v299, %v338
    %vm398 = vcmask 97280
    %v399 = vsel %vm398, %v397, %v367
    %vm400 = vcmask 359424
    %v401 = vsel %vm400, %v399, %v396
    %v402 = vpack.c.bf16 %v401, %v401
    %v403 = vld [vmem:[%s3] sm:$0xf]
    %v404 = vld [vmem:[%s3 + $0x4] sm:$0xf]
    %v405 = vld [vmem:[%s3 + $0x8] sm:$0xf]
    %v406 = vld [vmem:[%s3 + $0xc] sm:$0xf]
    %v407 = vld [vmem:[%s3 + $0x10] sm:$0xf]
    %v408 = vld [vmem:[%s3 + $0x14] sm:$0xf]
    %v409 = vld [vmem:[%s3 + $0x18] sm:$0xf]
    %v410 = vld [vmem:[%s3 + $0x1c] sm:$0xf]
    %v411 = vld [vmem:[%s3 + $0x20] sm:$0xf]
    %v412 = vld [vmem:[%s3 + $0x24] sm:$0x3]
    %v413 = vperm.slane %v40, 0
    %v424 = vunpack.c.l.b16 %v403
    %v425 = vunpack.c.l.b16 %v404
    %v426 = vunpack.c.l.b16 %v405
    %v427 = vunpack.c.l.b16 %v406
    %v428 = vunpack.c.l.b16 %v407
    %v429 = vunpack.c.l.b16 %v408
    %v430 = vunpack.c.l.b16 %v409
    %v431 = vunpack.c.l.b16 %v410
    %v432 = vunpack.c.l.b16 %v411
    %v433 = vunpack.c.l.b16 %v412
    %v434 = vpack.c.b16 %v425, %v424
    %v435 = vpack.c.b16 %v427, %v426
    %v436 = vpack.c.b16 %v429, %v428
    %v437 = vpack.c.b16 %v431, %v430
    %v438 = vpack.c.b16 %v433, %v432
    %vm443 = vcmask 621568
    %v445 = vsel %vm443, %v402, 0
    %vm447 = vcmask 1045504
    %v449 = vsel %vm447, %v438, 0
    %451 = vmatpush.bf16.msra.mxu0 0
    %452 = vmatpush.bf16.msra.mxu0 0
    %453 = vmatpush.bf16.msra.mxu0 0
    %454 = vmatpush.bf16.msra.mxu0 %v449
    %455 = vmatpush.bf16.msra.mxu0 %v437
    %456 = vmatpush.bf16.msra.mxu0 %v436
    %457 = vmatpush.bf16.msra.mxu0 %v435
    %458 = vmatpush.bf16.msra.mxu0 %v434
    %459 = vmatmul.bf16.gmra.mxu0 %v445
    %v460 = vpop.f32.mrf.mxu0
    %v461 = vadd.f32 %v413, %v460
    %v462 = vpop.f32.mrf.mxu0
    %463 = vdwg.mxu0
    %464 = vst.msk [vmem:[#allocation5] sm:$0xff] %vm111, %v461
    // Predicated region
    $region26: #{tpu_custom_call.1} parent=1 // pred_check
      _
    $region27: #{tpu_custom_call.1} parent=1 // pred_check_branch
      %466 = sbr.rel (0) target = $region29
    $region28: #{tpu_custom_call.1} parent=1 // pred_region
      %468 = vsyncadd [#allocation4], 0
      %s470 = sshll.u32 [#allocation5], 4
      %s471 = int_to_ptr.vmem [resolvable:$true] %s470
      %s472 = sshll.u32 %s5, 4
      %s473 = int_to_ptr.hbm [resolvable:$true] %s472
      %475 = dma.vmem_to_hbm [thread:$0]  %s471, 128, %s473, [#allocation4]
    $region29: #{tpu_custom_call.1} parent=1 // pred_fallthru
      _
    // Predicated region
    $region30: #{tpu_custom_call.1} parent=1 // pred_check
      _
    $region31: #{tpu_custom_call.1} parent=1 // pred_check_branch
      %477 = sbr.rel (0) target = $region33
    $region32: #{tpu_custom_call.1} parent=1 // pred_region
      %479 = dma.done [#allocation4], 128
    $region33: #{tpu_custom_call.1} parent=1 // pred_fallthru
      _
    %480 = vsyncpa [#allocation3], 1
    %481 = vsyncpa [#allocation4], 1

</llo_original>
